<compile_context>
chip_gen: v6e
topology: v6e:2x2x1
jax: 0.10.0
libtpu: 0.0.40
codegen_flags: <defaults>
</compile_context>

<pallas_src>
import functools
import math

import jax
import jax.numpy as jnp
from jax.experimental import pallas as pl
from jax.experimental.pallas import tpu as pltpu


def autopad(k, p=None):
    if p is None:
        p = k // 2 if isinstance(k, int) else [x // 2 for x in k]
    return p


# ---------------------------------------------------------------------------
# Kernels
# ---------------------------------------------------------------------------
def _conv_bn_silu_kernel(xm_ref, w_ref, shift_ref, o_ref, *, k, s, th):
    """Row block whose (k-s) halo rows already live inside the main block.

    xm_ref:    (rows_main, W*Cin)   lane-fused input rows (bf16)
    w_ref:     (k, W*Cin, TC)       banded weights, BN scale folded in (bf16)
    shift_ref: (1, TC)              BN shift per output column (f32)
    o_ref:     (th, TC)             lane-dense output tile
    """
    acc = None
    for kh in range(k):                       # k wide MXU matmuls, f32 accumulate
        if s == 1:
            lhs = xm_ref[pl.ds(kh, th), :]    # direct ref window - no value slice
        else:
            lhs = xm_ref[pl.ds(kh, th, s), :]
        part = jnp.dot(lhs, w_ref[kh], preferred_element_type=jnp.float32)
        acc = part if acc is None else acc + part
    y = acc + shift_ref[...]                  # BatchNorm shift (scale is in w), f32
    y = y * pl.reciprocal(1.0 + jnp.exp(-y), approx=True)   # SiLU: exp + rcp on EUP
    o_ref[...] = y.astype(o_ref.dtype)


def _conv_bn_silu_halo_kernel(xm_ref, xh_ref, w_ref, shift_ref, o_ref, acc_ref,
                              *, k, s, th):
    """Row-tiled variant: the (k-s) halo rows arrive as a separate tiny input and
    their contribution is accumulated with small extra matmuls into a f32 VMEM
    scratch accumulator (no in-kernel concatenate / block copy).

    xm_ref:  (th*s, W*Cin)     main input rows
    xh_ref:  (k - s, W*Cin)    halo rows just below the main block
    acc_ref: (th, TC)          f32 scratch accumulator
    """
    for kh in range(k):
        # Output rows whose input row i*s + kh still falls inside the main block.
        m_main = min(th, (th * s - 1 - kh) // s + 1)
        if s == 1:
            lhs = xm_ref[pl.ds(kh, m_main), :]
        else:
            lhs = xm_ref[pl.ds(kh, m_main, s), :]
        part = jnp.dot(lhs, w_ref[kh], preferred_element_type=jnp.float32)
        if kh == 0:                            # kh == 0 always covers all th rows
            acc_ref[...] = part
        elif m_main == th:
            acc_ref[...] += part
        else:
            acc_ref[pl.ds(0, m_main), :] += part
        # Remaining output rows read their input row from the halo.
        m_halo = th - m_main
        if m_halo > 0:
            h0 = m_main * s + kh - th * s
            if s == 1:
                lhs_h = xh_ref[pl.ds(h0, m_halo), :]
            else:
                lhs_h = xh_ref[pl.ds(h0, m_halo, s), :]
            part_h = jnp.dot(lhs_h, w_ref[kh],
                             preferred_element_type=jnp.float32)
            acc_ref[pl.ds(m_main, m_halo), :] += part_h

    y = acc_ref[...] + shift_ref[...]
    y = y * pl.reciprocal(1.0 + jnp.exp(-y), approx=True)
    o_ref[...] = y.astype(o_ref.dtype)


# ---------------------------------------------------------------------------
# Tiling / platform helpers
# ---------------------------------------------------------------------------
def _pick_block_rows(ho):
    """Output-row tile height: the largest 8-aligned divisor of `ho`, capped at
    64 so the f32 accumulator tile stays <= 128 KiB with 512-lane column tiles.
    Falls back to a single full-height block (full-dim blocks are exempt from
    the (8,128) BlockSpec rule), so every (ho, s) is supported."""
    if ho <= 64:
        return ho
    for cand in (64, 32, 16, 8):
        if ho % cand == 0:
            return cand
    return ho  # TODO(synk): ragged row tiling for awkward ho; full-height fallback


def _pick_col_tile(cols, row_steps, target_steps=8):
    """Output-column (lane) tile: prefer wide 512-lane tiles, but split further
    (down to 128) when the batch/row grid alone would under-feed a v7x megacore;
    always a multiple of 128 (or the full width)."""
    if cols < 256:
        return cols
    tile = cols
    for cand in (512, 256, 128):
        if cols % cand != 0:
            continue
        tile = cand
        if row_steps * (cols // cand) >= target_steps:
            break
    return tile


@functools.lru_cache(maxsize=None)
def _vmem_limit_bytes():
    """Generation-aware VMEM budget (v5e/v6e: 128 MiB physical, v7x: 64 MiB)."""
    try:
        cap = int(pltpu.get_tpu_info().vmem_capacity_bytes)
    except Exception:
        cap = 64 * 1024 * 1024          # conservative: fits every known TPU
    return max(32 * 1024 * 1024, min(cap * 3 // 4, 100 * 1024 * 1024))


@functools.lru_cache(maxsize=None)
def _single_buffering_supported():
    """Feature-probe pl.Buffered(1) (single-buffered grid-invariant operands)."""
    try:
        def probe_kernel(w_ref, x_ref, o_ref):
            o_ref[...] = x_ref[...] + w_ref[...]

        probe = pl.pallas_call(
            probe_kernel,
            grid=(2,),
            in_specs=[pl.BlockSpec((8, 128), lambda i: (0, 0),
                                   pipeline_mode=pl.Buffered(1)),
                      pl.BlockSpec((8, 128), lambda i: (i, 0))],
            out_specs=pl.BlockSpec((8, 128), lambda i: (i, 0)),
            out_shape=jax.ShapeDtypeStruct((16, 128), jnp.float32),
        )
        jax.block_until_ready(probe(jnp.zeros((8, 128), jnp.float32),
                                    jnp.zeros((16, 128), jnp.float32)))
        return True
    except Exception:
        return False


# ---------------------------------------------------------------------------
# Fused Conv -> BN(eval) -> SiLU
# ---------------------------------------------------------------------------
@functools.partial(
    jax.jit,
    static_argnames=("k", "s", "p", "eps", "compute_dtype", "out_dtype",
                     "single_buffer", "vmem_limit"))
def _conv_bn_silu_impl(x_nchw, weight_oihw, gamma, beta, running_mean,
                       running_var, *, k, s, p, eps, compute_dtype, out_dtype,
                       single_buffer, vmem_limit):
    n, c1, h, w_in = x_nchw.shape
    c2 = weight_oihw.shape[0]
    ho = (h + 2 * p - k) // s + 1
    wo = (w_in + 2 * p - k) // s + 1
    hp = h + 2 * p
    d_in = w_in * c1
    cols = wo * c2
    out_dt = x_nchw.dtype if out_dtype is None else out_dtype

    th = _pick_block_rows(ho)
    nj = ho // th
    khalo = max(k - s, 0)
    use_halo = (nj > 1) and (khalo > 0)
    rows_main = hp if nj == 1 else th * s
    tc = _pick_col_tile(cols, n * nj)
    nc = cols // tc

    # ---- layout plumbing / constant folding (fused by XLA under this jit) ----
    # NCHW -> NHWC -> pad H only -> fuse (W, Cin) into the lane axis.
    # TODO(synk): keep this lane-fused slab as the inter-layer format and fold
    #             the H padding into the kernel to drop these HBM passes.
    x_nhwc = jnp.transpose(x_nchw, (0, 2, 3, 1))
    x_padh = jnp.pad(x_nhwc, ((0, 0), (p, p), (0, 0), (0, 0)))
    x_rows = x_padh.reshape(n, hp, d_in).astype(compute_dtype)

    if use_halo:
        # The (k-s) rows just below each row block (exact, no over-fetch).
        x_halo = jnp.stack(
            [x_rows[:, (j + 1) * th * s:(j + 1) * th * s + khalo]
             for j in range(nj)], axis=1)                 # (n, nj, khalo, W*Cin)

    # Fold BatchNorm (inference form) into the weights / a per-channel shift.
    scale = (gamma / jnp.sqrt(running_var + eps)).astype(jnp.float32)
    shift = (beta - running_mean * scale).astype(jnp.float32)
    w_hwio = jnp.transpose(weight_oihw, (2, 3, 1, 0)).astype(jnp.float32)
    w_sc = w_hwio * scale[None, None, None, :]            # (k, k, c1, c2)

    # Banded ("Toeplitz") weight over fused (W x Cin) -> (WO x Cout); the conv's
    # width zero-padding is folded in here, so x is never padded along W.
    #   wbig[kh, iw*c1+ci, ow*c2+co] = w_sc[kh, iw - ow*s + p, ci, co]  (in band)
    # TODO(synk): switch to an in-kernel im2col patch matmul once W/k makes the
    #             banded matmul's FLOP inflation (W/k x) MXU-bound.
    iw = jnp.arange(w_in)
    ow = jnp.arange(wo)
    kw_idx = iw[:, None] - ow[None, :] * s + p             # (w_in, wo)
    in_band = (kw_idx >= 0) & (kw_idx < k)
    kw_safe = jnp.clip(kw_idx, 0, k - 1)
    wb = w_sc[:, kw_safe]                                  # (k, w_in, wo, c1, c2)
    wb = jnp.where(in_band[None, :, :, None, None], wb, 0.0)
    wbig = (wb.transpose(0, 1, 3, 2, 4)
              .reshape(k, d_in, cols).astype(compute_dtype))
    shift_row = jnp.tile(shift, wo).reshape(1, cols)       # (1, WO*Cout), f32

    # ---- gridded, software-pipelined pallas_call ----
    # Column tiles outermost: the weight block is reused across all (batch, row)
    # steps and only changes nc times; batch/row axes write disjoint tiles.
    def _invariant_spec(shape, imap):
        if single_buffer and nc == 1:        # truly grid-invariant -> 1 buffer
            return pl.BlockSpec(shape, imap, pipeline_mode=pl.Buffered(1))
        return pl.BlockSpec(shape, imap)

    in_specs = [pl.BlockSpec((None, rows_main, d_in), lambda c, b, j: (b, j, 0))]
    inputs = [x_rows]
    if use_halo:
        in_specs.append(
            pl.BlockSpec((None, None, khalo, d_in), lambda c, b, j: (b, j, 0, 0)))
        inputs.append(x_halo)
    in_specs.append(_invariant_spec((k, d_in, tc), lambda c, b, j: (0, 0, c)))
    in_specs.append(_invariant_spec((1, tc), lambda c, b, j: (0, c)))
    inputs += [wbig, shift_row]

    if use_halo:
        kernel = functools.partial(_conv_bn_silu_halo_kernel, k=k, s=s, th=th)
        scratch_shapes = [pltpu.VMEM((th, tc), jnp.float32)]
    else:
        kernel = functools.partial(_conv_bn_silu_kernel, k=k, s=s, th=th)
        scratch_shapes = []

    cost = pl.CostEstimate(                  # true conv cost, not the banded one
        flops=2 * n * ho * wo * c2 * c1 * k * k,
        transcendentals=n * ho * wo * c2,
        bytes_accessed=(x_nchw.size * x_nchw.dtype.itemsize
                        + k * d_in * cols * jnp.dtype(compute_dtype).itemsize
                        + n * ho * cols * jnp.dtype(out_dt).itemsize))

    out_slab = pl.pallas_call(
        kernel,
        out_shape=jax.ShapeDtypeStruct((n, ho, cols), out_dt),
        grid=(nc, n, nj),
        in_specs=in_specs,
        out_specs=pl.BlockSpec((None, th, tc), lambda c, b, j: (b, j, c)),
        scratch_shapes=scratch_shapes,
        compiler_params=pltpu.CompilerParams(
            dimension_semantics=("parallel", "parallel", "parallel"),
            vmem_limit_bytes=vmem_limit),
        cost_estimate=cost,
    )(*inputs)

    # Lane-dense slab (N, HO, WO*Cout) -> NCHW (PyTorch layout).
    return out_slab.reshape(n, ho, wo, c2).transpose(0, 3, 1, 2)


def conv_bn_silu(x, weight, gamma, beta, running_mean, running_var,
                 *, k, s, p, eps=1e-5, compute_dtype=jnp.bfloat16,
                 out_dtype=None):
    """Conv(c1,c2,k,s,p,g=1,bias=False) -> BatchNorm2d(eval) -> SiLU.  NCHW in/out."""
    # TODO(synk): groups > 1 not implemented (module default g=1).
    return _conv_bn_silu_impl(
        x, weight, gamma, beta, running_mean, running_var,
        k=k, s=s, p=p, eps=eps, compute_dtype=compute_dtype, out_dtype=out_dtype,
        single_buffer=_single_buffering_supported(),
        vmem_limit=_vmem_limit_bytes())


# ---------------------------------------------------------------------------
# Reference (plain XLA) for a numerical sanity check
# ---------------------------------------------------------------------------
def _reference(x, w, gamma, beta, mean, var, *, k, s, p, eps=1e-5):
    y = jax.lax.conv_general_dilated(
        x, w, window_strides=(s, s), padding=[(p, p), (p, p)],
        dimension_numbers=("NCHW", "OIHW", "NCHW"))
    scale = gamma / jnp.sqrt(var + eps)
    y = y * scale[None, :, None, None] + (beta - mean * scale)[None, :, None, None]
    return y * jax.nn.sigmoid(y)


if __name__ == "__main__":
    # Module config: Conv(c1=4, c2=8, k=3, s=1) -> padding = autopad(3) = 1, g=1.
    c1, c2, k, s = 4, 8, 3, 1
    p = autopad(k)

    key = jax.random.PRNGKey(0)
    kx, kw_, kg, kb, km, kv, kx2 = jax.random.split(key, 7)

    x = jax.random.normal(kx, (2, c1, 16, 16), dtype=jnp.float32)
    fan_in = c1 * k * k
    bound = 1.0 / math.sqrt(fan_in)
    weight = jax.random.uniform(kw_, (c2, c1, k, k), jnp.float32, -bound, bound)
    gamma = 1.0 + 0.1 * jax.random.normal(kg, (c2,), jnp.float32)
    beta = 0.1 * jax.random.normal(kb, (c2,), jnp.float32)
    running_mean = 0.1 * jax.random.normal(km, (c2,), jnp.float32)
    running_var = 1.0 + 0.1 * jax.random.uniform(kv, (c2,), jnp.float32)

    # Small case: a single full-height row block (halo folded into the main
    # block), nc == 1 (exercises the single-buffered resident weight path).
    out = conv_bn_silu(x, weight, gamma, beta, running_mean, running_var,
                       k=k, s=s, p=p)
    jax.block_until_ready(out)
    assert out.shape == (2, c2, 16, 16), out.shape
    ref = _reference(x, weight, gamma, beta, running_mean, running_var,
                     k=k, s=s, p=p)
    err = float(jnp.max(jnp.abs(out - ref)))
    assert err < 0.15, f"max abs err {err}"   # bf16 MXU inputs, f32 accumulation

    # Larger case: exercises row tiling + the halo-matmul path, column tiling
    # (nc > 1) and a bf16 output slab.
    x2 = jax.random.normal(kx2, (1, c1, 128, 128), dtype=jnp.float32)
    out2 = conv_bn_silu(x2, weight, gamma, beta, running_mean, running_var,
                        k=k, s=s, p=p, out_dtype=jnp.bfloat16)
    jax.block_until_ready(out2)
    assert out2.shape == (1, c2, 128, 128), out2.shape
    ref2 = _reference(x2, weight, gamma, beta, running_mean, running_var,
                      k=k, s=s, p=p)
    err2 = float(jnp.max(jnp.abs(out2.astype(jnp.float32) - ref2)))
    assert err2 < 0.15, f"max abs err {err2}"

    print("KERNEL_OK")
</pallas_src>

<mosaic_0001>
module attributes {stable_mosaic.version = 11 : i64} {
  func.func @probe_kernel(%arg0: i32, %arg1: memref<8x128xf32, #tpu.memory_space<vmem>>, %arg2: memref<8x128xf32, #tpu.memory_space<vmem>>, %arg3: memref<8x128xf32, #tpu.memory_space<vmem>>) attributes {dimension_semantics = [#tpu.dimension_semantics<arbitrary>], iteration_bounds = array<i64: 2>, scalar_prefetch = 0 : i64, scratch_operands = 0 : i64, tpu.core_type = #tpu.core_type<tc>, window_params = [{pipeline_mode = #tpu.pipeline_mode<synchronous>, transform_indices = @transform_0, window_bounds = array<i64: 8, 128>}, {transform_indices = @transform_1, window_bounds = array<i64: 8, 128>}, {transform_indices = @transform_2, window_bounds = array<i64: 8, 128>}]} {
    %c0 = arith.constant 0 : index
    %c0_0 = arith.constant 0 : index
    %0 = vector.load %arg2[%c0, %c0_0] : memref<8x128xf32, #tpu.memory_space<vmem>>, vector<8x128xf32>
    %c0_1 = arith.constant 0 : index
    %c0_2 = arith.constant 0 : index
    %1 = vector.load %arg1[%c0_1, %c0_2] : memref<8x128xf32, #tpu.memory_space<vmem>>, vector<8x128xf32>
    %2 = arith.addf %0, %1 : vector<8x128xf32>
    %c0_3 = arith.constant 0 : index
    %c0_4 = arith.constant 0 : index
    %3 = vector.load %arg3[%c0_3, %c0_4] : memref<8x128xf32, #tpu.memory_space<vmem>>, vector<8x128xf32>
    tpu.vector_store %arg3[%c0_3, %c0_4], %2 {strides = array<i32>} : memref<8x128xf32, #tpu.memory_space<vmem>>, vector<8x128xf32>,
    return
  }
  func.func @transform_0(%arg0: i32) -> (i32, i32) {
    %c0_i32 = arith.constant 0 : i32
    %c0_i32_0 = arith.constant 0 : i32
    %c0_i32_1 = arith.constant 0 : i32
    return %c0_i32, %c0_i32_0 : i32, i32
  }
  func.func @transform_1(%arg0: i32) -> (i32, i32) {
    %c0_i32 = arith.constant 0 : i32
    %c0_i32_0 = arith.constant 0 : i32
    return %arg0, %c0_i32 : i32, i32
  }
  func.func @transform_2(%arg0: i32) -> (i32, i32) {
    %c0_i32 = arith.constant 0 : i32
    %c0_i32_0 = arith.constant 0 : i32
    return %arg0, %c0_i32 : i32, i32
  }
}

module attributes {stable_mosaic.version = 11 : i64} {
  func.func @_conv_bn_silu_kernel(%arg0: i32, %arg1: i32, %arg2: i32, %arg3: memref<1x18x64xbf16, #tpu.memory_space<vmem>>, %arg4: memref<3x64x128xbf16, #tpu.memory_space<vmem>>, %arg5: memref<1x128xf32, #tpu.memory_space<vmem>>, %arg6: memref<1x16x128xf32, #tpu.memory_space<vmem>>) attributes {dimension_semantics = [#tpu.dimension_semantics<parallel>, #tpu.dimension_semantics<parallel>, #tpu.dimension_semantics<parallel>], iteration_bounds = array<i64: 1, 2, 1>, scalar_prefetch = 0 : i64, scratch_operands = 0 : i64, tpu.core_type = #tpu.core_type<tc>, window_params = [{transform_indices = @transform_0, window_bounds = array<i64: 1, 18, 64>}, {transform_indices = @transform_1, window_bounds = array<i64: 3, 64, 128>}, {transform_indices = @transform_2, window_bounds = array<i64: 1, 128>}, {transform_indices = @transform_3, window_bounds = array<i64: 1, 16, 128>}]} {
    %c0 = arith.constant 0 : index
    %c0_0 = arith.constant 0 : index
    %c0_1 = arith.constant 0 : index
    %0 = vector.load %arg3[%c0, %c0_0, %c0_1] : memref<1x18x64xbf16, #tpu.memory_space<vmem>>, vector<1x16x64xbf16>
    %1 = vector.shape_cast %0 : vector<1x16x64xbf16> to vector<16x64xbf16>
    %c0_2 = arith.constant 0 : index
    %c0_3 = arith.constant 0 : index
    %c0_4 = arith.constant 0 : index
    %2 = vector.load %arg4[%c0_2, %c0_3, %c0_4] : memref<3x64x128xbf16, #tpu.memory_space<vmem>>, vector<1x64x128xbf16>
    %3 = vector.shape_cast %2 : vector<1x64x128xbf16> to vector<64x128xbf16>
    %cst = arith.constant dense<0.000000e+00> : vector<16x128xf32>
    %4 = tpu.matmul %1, %3, %cst {dimension_numbers = #tpu.dot_dimension_numbers<[1], [0], [0], [1], [0, 0, 1, 1], [], []>} : vector<16x64xbf16>, vector<64x128xbf16>, vector<16x128xf32> -> vector<16x128xf32>
    %c0_5 = arith.constant 0 : index
    %c1 = arith.constant 1 : index
    %c0_6 = arith.constant 0 : index
    %5 = vector.load %arg3[%c0_5, %c1, %c0_6] : memref<1x18x64xbf16, #tpu.memory_space<vmem>>, vector<1x16x64xbf16>
    %6 = vector.shape_cast %5 : vector<1x16x64xbf16> to vector<16x64xbf16>
    %c1_7 = arith.constant 1 : index
    %c0_8 = arith.constant 0 : index
    %c0_9 = arith.constant 0 : index
    %7 = vector.load %arg4[%c1_7, %c0_8, %c0_9] : memref<3x64x128xbf16, #tpu.memory_space<vmem>>, vector<1x64x128xbf16>
    %8 = vector.shape_cast %7 : vector<1x64x128xbf16> to vector<64x128xbf16>
    %cst_10 = arith.constant dense<0.000000e+00> : vector<16x128xf32>
    %9 = tpu.matmul %6, %8, %cst_10 {dimension_numbers = #tpu.dot_dimension_numbers<[1], [0], [0], [1], [0, 0, 1, 1], [], []>} : vector<16x64xbf16>, vector<64x128xbf16>, vector<16x128xf32> -> vector<16x128xf32>
    %10 = arith.addf %4, %9 : vector<16x128xf32>
    %c0_11 = arith.constant 0 : index
    %c2 = arith.constant 2 : index
    %c0_12 = arith.constant 0 : index
    %11 = vector.load %arg3[%c0_11, %c2, %c0_12] : memref<1x18x64xbf16, #tpu.memory_space<vmem>>, vector<1x16x64xbf16>
    %12 = vector.shape_cast %11 : vector<1x16x64xbf16> to vector<16x64xbf16>
    %c2_13 = arith.constant 2 : index
    %c0_14 = arith.constant 0 : index
    %c0_15 = arith.constant 0 : index
    %13 = vector.load %arg4[%c2_13, %c0_14, %c0_15] : memref<3x64x128xbf16, #tpu.memory_space<vmem>>, vector<1x64x128xbf16>
    %14 = vector.shape_cast %13 : vector<1x64x128xbf16> to vector<64x128xbf16>
    %cst_16 = arith.constant dense<0.000000e+00> : vector<16x128xf32>
    %15 = tpu.matmul %12, %14, %cst_16 {dimension_numbers = #tpu.dot_dimension_numbers<[1], [0], [0], [1], [0, 0, 1, 1], [], []>} : vector<16x64xbf16>, vector<64x128xbf16>, vector<16x128xf32> -> vector<16x128xf32>
    %16 = arith.addf %10, %15 : vector<16x128xf32>
    %c0_17 = arith.constant 0 : index
    %c0_18 = arith.constant 0 : index
    %17 = vector.load %arg5[%c0_17, %c0_18] : memref<1x128xf32, #tpu.memory_space<vmem>>, vector<1x128xf32>
    %18 = vector.broadcast %17 : vector<1x128xf32> to vector<16x128xf32>
    %19 = arith.addf %16, %18 : vector<16x128xf32>
    %cst_19 = arith.constant 0.000000e+00 : f32
    %20 = vector.broadcast %cst_19 : f32 to vector<16x128xf32>
    %21 = arith.subf %20, %19 : vector<16x128xf32>
    %22 = math.exp %21 : vector<16x128xf32>
    %cst_20 = arith.constant 1.000000e+00 : f32
    %23 = vector.broadcast %cst_20 : f32 to vector<16x128xf32>
    %24 = arith.addf %23, %22 : vector<16x128xf32>
    %25 = tpu.reciprocal %24 {approx = true} : vector<16x128xf32> -> vector<16x128xf32>
    %26 = arith.mulf %19, %25 : vector<16x128xf32>
    %c0_21 = arith.constant 0 : index
    %c0_22 = arith.constant 0 : index
    %c0_23 = arith.constant 0 : index
    %27 = vector.load %arg6[%c0_21, %c0_22, %c0_23] : memref<1x16x128xf32, #tpu.memory_space<vmem>>, vector<1x16x128xf32>
    %28 = vector.shape_cast %27 : vector<1x16x128xf32> to vector<16x128xf32>
    %29 = vector.shape_cast %26 : vector<16x128xf32> to vector<1x16x128xf32>
    tpu.vector_store %arg6[%c0_21, %c0_22, %c0_23], %29 {strides = array<i32>} : memref<1x16x128xf32, #tpu.memory_space<vmem>>, vector<1x16x128xf32>,
    return
  }
  func.func @transform_0(%arg0: i32, %arg1: i32, %arg2: i32) -> (i32, i32, i32) {
    %c0_i32 = arith.constant 0 : i32
    %c0_i32_0 = arith.constant 0 : i32
    return %arg1, %arg2, %c0_i32 : i32, i32, i32
  }
  func.func @transform_1(%arg0: i32, %arg1: i32, %arg2: i32) -> (i32, i32, i32) {
    %c0_i32 = arith.constant 0 : i32
    %c0_i32_0 = arith.constant 0 : i32
    %c0_i32_1 = arith.constant 0 : i32
    return %c0_i32, %c0_i32_0, %arg0 : i32, i32, i32
  }
  func.func @transform_2(%arg0: i32, %arg1: i32, %arg2: i32) -> (i32, i32) {
    %c0_i32 = arith.constant 0 : i32
    %c0_i32_0 = arith.constant 0 : i32
    return %c0_i32, %arg0 : i32, i32
  }
  func.func @transform_3(%arg0: i32, %arg1: i32, %arg2: i32) -> (i32, i32, i32) {
    %c0_i32 = arith.constant 0 : i32
    return %arg1, %arg2, %arg0 : i32, i32, i32
  }
}

</mosaic_0001>

<llo_original>
// kernel: tpu_custom_call.1
$region0: #{tpu_custom_call.1}
  #allocation0 [shape = 'u32[]', space=smem, size = 0x4, offset = 0x4, fixed_abs, tag = 'smem constant byte address 0x4 - core index']
  #allocation1 [shape = 'u32[144,128]{1,0:T(1,128)}', space=vmem, size = 0x12000, scoped, tag = 'internal scratch']
  %s0 = inlined_call_operand.hbm [shape: f32[8,128], index: 0, kind: input, shape index: {}]
  %s1 = inlined_call_operand.hbm [shape: f32[16,128], index: 1, kind: input, shape index: {}]
  %s2 = inlined_call_operand.hbm [shape: f32[16,128], index: 2, kind: output, shape index: {}]
  %s3 = sld [smem:[#allocation0]]
  $region49: #{tpu_custom_call.1} parent=0
    _
  %s5 = ssub.s32 1, %s3
  %s6 = scalar_select 0, %s5, %s3
  $region1: #{tpu_custom_call.1} parent=0
    #allocation2 [shape = 'u8[4096]{0}', space=vmem, size = 0x1000, scoped, tag = 'input window, operand 0, single buffered']
    #allocation3 [shape = 's32[2]{0}', space=sflag, size = 0x8, scoped, tag = 'scoped memory for tpu_custom_call.1']
    #allocation4 [shape = 's32[2]{0}', space=sflag, size = 0x8, scoped, tag = 'scoped memory for tpu_custom_call.1']
    #allocation5 [shape = 'u8[8192]{0}', space=vmem, size = 0x2000, scoped, tag = 'input window, operand 1']
    #allocation6 [shape = 's32[2]{0}', space=sflag, size = 0x8, scoped, tag = 'scoped memory for tpu_custom_call.1']
    #allocation7 [shape = 'u8[8192]{0}', space=vmem, size = 0x2000, scoped, tag = 'output window, operand 0']
    %7 = vsyncpa [#allocation3], 0
    %8 = vsyncpa [#allocation6], 0
    %s9 = scalar_lea.sflag [#allocation6], 1
    %10 = vsyncpa %s9, 0
    %11 = vsyncpa [#allocation4], 0
    %s12 = scalar_lea.sflag [#allocation4], 1
    %13 = vsyncpa %s12, 0
    loop: start=0, step=1, limit=4
    $region2: #{tpu_custom_call.1} parent=1 // loop_pre_header
      _
    $region3: #{tpu_custom_call.1} parent=1 // loop_header
      %s15 = sphi 0, %s19
      %p16 = scmp.ge.s32.totalorder %s15, 4
      %s23 = sphi 0, %s23
      %s25 = sphi 0, %s23
      %s26 = sphi 0, %s25
      %s40 = sphi 0, %s26
      %s46 = sphi 0, %s48
      %s49 = sphi 0, %s46
      %s50 = sphi 0, %s49
      %s66 = sphi 0, %s50
      %s72 = sphi 0, %s74
      %s75 = sphi 0, %s72
      %s76 = sphi 0, %s75
      %s92 = sphi 0, %s76
    $region4: #{tpu_custom_call.1} parent=1 // loop_header_branch
      %18 = sbr.rel (%p16) target = $region8
    $region5: #{tpu_custom_call.1} parent=1 // loop_body
      %s20 = ssub.s32 %s15, 1
      %s21 = ssub.s32 %s15, 2
      %s22 = sadd.s32 %s15, 1
      %s24 = sadd.s32 %s23, 1
      %p27 = scmp.eq.s32.totalorder %s15, 1
      %p28 = scmp.ne.s32.totalorder %s23, %s25
      %p29 = scmp.eq.s32.totalorder %s15, 0
      %p30 = por %p28, %p29
      %p31 = scmp.ne.s32.totalorder %s23, %s25
      %p32 = scmp.eq.s32.totalorder %s20, 1
      %p33 = por %p31, %p32
      %p34 = scmp.ne.s32.totalorder %s25, %s26
      %p35 = scmp.eq.s32.totalorder %s20, 0
      %p36 = por %p34, %p35
      %p37 = scmp.ne.s32.totalorder %s25, %s26
      %p38 = scmp.eq.s32.totalorder %s21, 1
      %p39 = por %p37, %p38
      %p41 = scmp.ne.s32.totalorder %s26, %s40
      %p42 = scmp.eq.s32.totalorder %s21, 0
      %p43 = por %p41, %p42
      %s44 = ssub.s32 %s15, %s22
      %p45 = scmp.eq.s32.totalorder %s44, 0
      %s47 = sadd.s32 %s46, 1
      %s48 = scalar_select %p45, %s46, %s47
      %p51 = pneg %p45
      %p52 = scmp.eq.s32.totalorder %s15, 1
      %p53 = por %p51, %p52
      %p54 = scmp.ne.s32.totalorder %s46, %s49
      %p55 = scmp.eq.s32.totalorder %s15, 0
      %p56 = por %p54, %p55
      %p57 = scmp.ne.s32.totalorder %s46, %s49
      %p58 = scmp.eq.s32.totalorder %s20, 1
      %p59 = por %p57, %p58
      %p60 = scmp.ne.s32.totalorder %s49, %s50
      %p61 = scmp.eq.s32.totalorder %s20, 0
      %p62 = por %p60, %p61
      %p63 = scmp.ne.s32.totalorder %s49, %s50
      %p64 = scmp.eq.s32.totalorder %s21, 1
      %p65 = por %p63, %p64
      %p67 = scmp.ne.s32.totalorder %s50, %s66
      %p68 = scmp.eq.s32.totalorder %s21, 0
      %p69 = por %p67, %p68
      %s70 = ssub.s32 %s15, %s22
      %p71 = scmp.eq.s32.totalorder %s70, 0
      %s73 = sadd.s32 %s72, 1
      %s74 = scalar_select %p71, %s72, %s73
      %p77 = pneg %p71
      %p78 = scmp.eq.s32.totalorder %s15, 1
      %p79 = por %p77, %p78
      %p80 = scmp.ne.s32.totalorder %s72, %s75
      %p81 = scmp.eq.s32.totalorder %s15, 0
      %p82 = por %p80, %p81
      %p83 = scmp.ne.s32.totalorder %s72, %s75
      %p84 = scmp.eq.s32.totalorder %s20, 1
      %p85 = por %p83, %p84
      %p86 = scmp.ne.s32.totalorder %s75, %s76
      %p87 = scmp.eq.s32.totalorder %s20, 0
      %p88 = por %p86, %p87
      %p89 = scmp.ne.s32.totalorder %s75, %s76
      %p90 = scmp.eq.s32.totalorder %s21, 1
      %p91 = por %p89, %p90
      %p93 = scmp.ne.s32.totalorder %s76, %s92
      %p94 = scmp.eq.s32.totalorder %s21, 0
      %p95 = por %p93, %p94
      %p96 = scmp.le.s32.totalorder 1, %s15
      %p97 = scmp.lt.s32.totalorder %s15, 3
      %p98 = pnand %p96, %p97
      %p99 = pneg %p98
      // Predicated region
      $region9: #{tpu_custom_call.1} parent=5 // pred_check
        _
      $region10: #{tpu_custom_call.1} parent=5 // pred_check_branch
        %101 = sbr.rel (%p98) target = $region12
      $region11: #{tpu_custom_call.1} parent=5 // pred_region
        %s102 = ssub.s32 %s15, 1
        // Predicated region
        $region13: #{tpu_custom_call.1} parent=11 // pred_check
          %p103 = pneg %p36
        $region14: #{tpu_custom_call.1} parent=11 // pred_check_branch
          %105 = sbr.rel (%p103) target = $region16
        $region15: #{tpu_custom_call.1} parent=11 // pred_region
          %s107 = ssub.s32 128, 128
          %108 = vsyncadd [#allocation3], %s107
          %s110 = sshll.u32 [#allocation2], 4
          %s111 = int_to_ptr.vmem [resolvable:$true] %s110
          %113 = dma.hbm_to_vmem [thread:$0]  %s0, 128, %s111, [#allocation3]
        $region16: #{tpu_custom_call.1} parent=11 // pred_fallthru
          _
      $region12: #{tpu_custom_call.1} parent=5 // pred_fallthru
        _
      %p114 = scmp.lt.s32.totalorder %s15, 2
      // Predicated region
      $region17: #{tpu_custom_call.1} parent=5 // pred_check
        %p115 = pneg %p114
      $region18: #{tpu_custom_call.1} parent=5 // pred_check_branch
        %117 = sbr.rel (%p115) target = $region20
      $region19: #{tpu_custom_call.1} parent=5 // pred_region
        // Predicated region
        $region21: #{tpu_custom_call.1} parent=19 // pred_check
          %p118 = pneg %p56
        $region22: #{tpu_custom_call.1} parent=19 // pred_check_branch
          %120 = sbr.rel (%p118) target = $region24
        $region23: #{tpu_custom_call.1} parent=19 // pred_region
          %s121 = sand.u32 %s46, 1
          %s122 = scalar_lea.sflag [#allocation6], %s121
          %s123 = sand.u32 %s46, 1
          %s124 = smul.addr %s123, 8
          %s125 = scalar_lea.vmem [#allocation5], %s124
          %s127 = ssub.s32 128, 128
          %128 = vsyncadd %s122, %s127
          %s129 = smul.addr %s15, 128
          %s130 = scalar_lea.hbm %s1, %s129
          %s132 = sshll.u32 %s125, 4
          %s133 = int_to_ptr.vmem [resolvable:$true] %s132
          %135 = dma.hbm_to_vmem [thread:$0]  %s130, 128, %s133, %s122
        $region24: #{tpu_custom_call.1} parent=19 // pred_fallthru
          _
      $region20: #{tpu_custom_call.1} parent=5 // pred_fallthru
        _
      %p136 = scmp.le.s32.totalorder 1, %s15
      %p137 = scmp.lt.s32.totalorder %s15, 3
      %p138 = pnand %p136, %p137
      %p139 = pneg %p138
      // Predicated region
      $region25: #{tpu_custom_call.1} parent=5 // pred_check
        _
      $region26: #{tpu_custom_call.1} parent=5 // pred_check_branch
        %141 = sbr.rel (%p138) target = $region28
      $region27: #{tpu_custom_call.1} parent=5 // pred_region
        %s142 = ssub.s32 %s15, 1
        // Predicated region
        $region29: #{tpu_custom_call.1} parent=27 // pred_check
          %p143 = pneg %p36
        $region30: #{tpu_custom_call.1} parent=27 // pred_check_branch
          %145 = sbr.rel (%p143) target = $region32
        $region31: #{tpu_custom_call.1} parent=27 // pred_region
          %146 = dma.done [#allocation3], 128
        $region32: #{tpu_custom_call.1} parent=27 // pred_fallthru
          _
        %s147 = sand.u32 %s49, 1
        %s148 = scalar_lea.sflag [#allocation6], %s147
        %s149 = sand.u32 %s49, 1
        %s150 = smul.addr %s149, 8
        %s151 = scalar_lea.vmem [#allocation5], %s150
        // Predicated region
        $region33: #{tpu_custom_call.1} parent=27 // pred_check
          %p152 = pneg %p62
        $region34: #{tpu_custom_call.1} parent=27 // pred_check_branch
          %154 = sbr.rel (%p152) target = $region36
        $region35: #{tpu_custom_call.1} parent=27 // pred_region
          %155 = dma.done %s148, 128
        $region36: #{tpu_custom_call.1} parent=27 // pred_fallthru
          _
        %p156 = pneg %p36
        %p157 = pneg %p33
        %s158 = sand.u32 %s49, 1
        %s159 = scalar_lea.sflag [#allocation6], %s158
        %s160 = sand.u32 %s49, 1
        %s161 = smul.addr %s160, 8
        %s162 = scalar_lea.vmem [#allocation5], %s161
        %p163 = pneg %p62
        %p164 = pneg %p59
        %p165 = pneg %p88
        %p166 = pneg %p85
        %s167 = sand.u32 %s75, 1
        %s168 = scalar_lea.sflag [#allocation4], %s167
        %s169 = sand.u32 %s75, 1
        %s170 = smul.addr %s169, 8
        %s171 = scalar_lea.vmem [#allocation7], %s170
        %v172 = vld [vmem:[%s151] sm:$0xff]
        %v173 = vld [vmem:[#allocation2] sm:$0xff]
        %v174 = vadd.f32 %v172, %v173
        %175 = vst [vmem:[%s171] sm:$0xff] %v174
        %s176 = sand.u32 %s75, 1
        %s177 = scalar_lea.sflag [#allocation4], %s176
        %s178 = sand.u32 %s75, 1
        %s179 = smul.addr %s178, 8
        %s180 = scalar_lea.vmem [#allocation7], %s179
        // Predicated region
        $region37: #{tpu_custom_call.1} parent=27 // pred_check
          %p181 = pneg %p85
        $region38: #{tpu_custom_call.1} parent=27 // pred_check_branch
          %183 = sbr.rel (%p181) target = $region40
        $region39: #{tpu_custom_call.1} parent=27 // pred_region
          %s185 = ssub.s32 128, 128
          %186 = vsyncadd %s177, %s185
          %s187 = smul.addr %s20, 128
          %s188 = scalar_lea.hbm %s2, %s187
          %s190 = sshll.u32 %s180, 4
          %s191 = int_to_ptr.vmem [resolvable:$true] %s190
          %193 = dma.vmem_to_hbm [thread:$0]  %s191, 128, %s188, %s177
        $region40: #{tpu_custom_call.1} parent=27 // pred_fallthru
          _
      $region28: #{tpu_custom_call.1} parent=5 // pred_fallthru
        _
      %p194 = scmp.le.s32.totalorder 2, %s15
      // Predicated region
      $region41: #{tpu_custom_call.1} parent=5 // pred_check
        %p195 = pneg %p194
      $region42: #{tpu_custom_call.1} parent=5 // pred_check_branch
        %197 = sbr.rel (%p195) target = $region44
      $region43: #{tpu_custom_call.1} parent=5 // pred_region
        %s198 = ssub.s32 %s15, 2
        // Predicated region
        $region45: #{tpu_custom_call.1} parent=43 // pred_check
          %p199 = pneg %p91
        $region46: #{tpu_custom_call.1} parent=43 // pred_check_branch
          %201 = sbr.rel (%p199) target = $region48
        $region47: #{tpu_custom_call.1} parent=43 // pred_region
          %s202 = sand.u32 %s76, 1
          %s203 = scalar_lea.sflag [#allocation4], %s202
          %s204 = sand.u32 %s76, 1
          %s205 = smul.addr %s204, 8
          %s206 = scalar_lea.vmem [#allocation7], %s205
          %207 = dma.done %s203, 128
        $region48: #{tpu_custom_call.1} parent=43 // pred_fallthru
          _
      $region44: #{tpu_custom_call.1} parent=5 // pred_fallthru
        _
    $region6: #{tpu_custom_call.1} parent=1 // loop_footer
      %s19 = sadd.s32 1, %s15
    $region7: #{tpu_custom_call.1} parent=1 // loop_footer_branch
      %14 = sbr.rel target = $region3
    $region8: #{tpu_custom_call.1} parent=1 // loop_exit
      _
    %208 = vsyncpa [#allocation3], 1
    %s209 = scalar_lea.sflag [#allocation3], 1
    %210 = vsyncpa %s209, 1
    %211 = vsyncpa [#allocation6], 1
    %s212 = scalar_lea.sflag [#allocation6], 1
    %213 = vsyncpa %s212, 1
    %214 = vsyncpa [#allocation4], 1
    %s215 = scalar_lea.sflag [#allocation4], 1
    %216 = vsyncpa %s215, 1

// kernel: tile.8
$region0: #{tile.8}
  #allocation0 [shape = 's32[1]{0}', space=sflag, size = 0x4, scoped, tag = 'scoped memory for tile.8']
  %s0 = inlined_call_operand.vmem [shape: f32[8], index: 0, kind: input, shape index: {}]
  %s1 = inlined_call_operand.vmem [shape: f32[16,8], index: 1, kind: output, shape index: {}]
  // Predicated region
  $region2: #{tile.8} parent=0 // pred_check
    _
  $region3: #{tile.8} parent=0 // pred_check_branch
    %3 = sbr.rel (0) target = $region5
  $region4: #{tile.8} parent=0 // pred_region
    _
  $region5: #{tile.8} parent=0 // pred_fallthru
    _
  %v4 = vld [vmem:[%s0] ss:$0 sm:$0xff]
  %5 = vst [vmem:[%s1] sm:$0xff] %v4
  %s6 = scalar_lea.vmem %s1, 8
  %7 = vst [vmem:[%s6] sm:$0xff] %v4

// kernel: tile.9
$region0: #{tile.9}
  %s0 = inlined_call_operand.vmem [shape: f32[16,8], index: 0, kind: input, shape index: {}]
  %s1 = inlined_call_operand.vmem [shape: f32[1,128], index: 1, kind: output, shape index: {}]
  $region1: #{tile.9} parent=0
    #allocation0 [shape = 'u8[4096]{0}', space=vmem, size = 0x1000, scoped, tag = 'scoped mem for output reshape']
    %v2 = vld [vmem:[%s0] sm:$0x1]
    %vm3 = vcmask 64512
    %4 = vst.msk [vmem:[#allocation0] sm:$0x1] %vm3, %v2
    %s5 = scalar_lea.vmem %s0, 15
    %v6 = vld [vmem:[%s5] sm:$0x1]
    %7 = vrot.lane.b32.xlu0 %v6, 120
    %v8 = vpop.permute.xlu0 %7
    %vm9 = vcmask 1048512
    %10 = vst.msk [vmem:[#allocation0] sm:$0x1] %vm9, %v8
    %s11 = scalar_lea.vmem %s0, 14
    %v12 = vld [vmem:[%s11] sm:$0x1]
    %13 = vrot.lane.b32.xlu0 %v12, 112
    %v14 = vpop.permute.xlu0 %13
    %vm15 = vcmask 982912
    %16 = vst.msk [vmem:[#allocation0] sm:$0x1] %vm15, %v14
    %s17 = scalar_lea.vmem %s0, 13
    %v18 = vld [vmem:[%s17] sm:$0x1]
    %19 = vrot.lane.b32.xlu0 %v18, 104
    %v20 = vpop.permute.xlu0 %19
    %vm21 = vcmask 917312
    %22 = vst.msk [vmem:[#allocation0] sm:$0x1] %vm21, %v20
    %s23 = scalar_lea.vmem %s0, 12
    %v24 = vld [vmem:[%s23] sm:$0x1]
    %25 = vrot.lane.b32.xlu0 %v24, 96
    %v26 = vpop.permute.xlu0 %25
    %vm27 = vcmask 851712
    %28 = vst.msk [vmem:[#allocation0] sm:$0x1] %vm27, %v26
    %s29 = scalar_lea.vmem %s0, 11
    %v30 = vld [vmem:[%s29] sm:$0x1]
    %31 = vrot.lane.b32.xlu0 %v30, 88
    %v32 = vpop.permute.xlu0 %31
    %vm33 = vcmask 786112
    %34 = vst.msk [vmem:[#allocation0] sm:$0x1] %vm33, %v32
    %s35 = scalar_lea.vmem %s0, 10
    %v36 = vld [vmem:[%s35] sm:$0x1]
    %37 = vrot.lane.b32.xlu0 %v36, 80
    %v38 = vpop.permute.xlu0 %37
    %vm39 = vcmask 720512
    %40 = vst.msk [vmem:[#allocation0] sm:$0x1] %vm39, %v38
    %s41 = scalar_lea.vmem %s0, 9
    %v42 = vld [vmem:[%s41] sm:$0x1]
    %43 = vrot.lane.b32.xlu0 %v42, 72
    %v44 = vpop.permute.xlu0 %43
    %vm45 = vcmask 654912
    %46 = vst.msk [vmem:[#allocation0] sm:$0x1] %vm45, %v44
    %s47 = scalar_lea.vmem %s0, 8
    %v48 = vld [vmem:[%s47] sm:$0x1]
    %49 = vrot.lane.b32.xlu0 %v48, 64
    %v50 = vpop.permute.xlu0 %49
    %vm51 = vcmask 589312
    %52 = vst.msk [vmem:[#allocation0] sm:$0x1] %vm51, %v50
    %s53 = scalar_lea.vmem %s0, 7
    %v54 = vld [vmem:[%s53] sm:$0x1]
    %55 = vrot.lane.b32.xlu0 %v54, 56
    %v56 = vpop.permute.xlu0 %55
    %vm57 = vcmask 523712
    %58 = vst.msk [vmem:[#allocation0] sm:$0x1] %vm57, %v56
    %s59 = scalar_lea.vmem %s0, 6
    %v60 = vld [vmem:[%s59] sm:$0x1]
    %61 = vrot.lane.b32.xlu0 %v60, 48
    %v62 = vpop.permute.xlu0 %61
    %vm63 = vcmask 458112
    %64 = vst.msk [vmem:[#allocation0] sm:$0x1] %vm63, %v62
    %s65 = scalar_lea.vmem %s0, 5
    %v66 = vld [vmem:[%s65] sm:$0x1]
    %67 = vrot.lane.b32.xlu0 %v66, 40
    %v68 = vpop.permute.xlu0 %67
    %vm69 = vcmask 392512
    %70 = vst.msk [vmem:[#allocation0] sm:$0x1] %vm69, %v68
    %s71 = scalar_lea.vmem %s0, 4
    %v72 = vld [vmem:[%s71] sm:$0x1]
    %73 = vrot.lane.b32.xlu0 %v72, 32
    %v74 = vpop.permute.xlu0 %73
    %vm75 = vcmask 326912
    %76 = vst.msk [vmem:[#allocation0] sm:$0x1] %vm75, %v74
    %s77 = scalar_lea.vmem %s0, 3
    %v78 = vld [vmem:[%s77] sm:$0x1]
    %79 = vrot.lane.b32.xlu0 %v78, 24
    %v80 = vpop.permute.xlu0 %79
    %vm81 = vcmask 261312
    %82 = vst.msk [vmem:[#allocation0] sm:$0x1] %vm81, %v80
    %s83 = scalar_lea.vmem %s0, 2
    %v84 = vld [vmem:[%s83] sm:$0x1]
    %85 = vrot.lane.b32.xlu0 %v84, 16
    %v86 = vpop.permute.xlu0 %85
    %vm87 = vcmask 195712
    %88 = vst.msk [vmem:[#allocation0] sm:$0x1] %vm87, %v86
    %s89 = scalar_lea.vmem %s0, 1
    %v90 = vld [vmem:[%s89] sm:$0x1]
    %91 = vrot.lane.b32.xlu0 %v90, 8
    %v92 = vpop.permute.xlu0 %91
    %vm93 = vcmask 130112
    %94 = vst.msk [vmem:[#allocation0] sm:$0x1] %vm93, %v92
    %s96 = sshll.u32 1, 1
    %s97 = ssub.s32 %s96, 1
    %v99 = vld [vmem:[#allocation0] sm:%s97]
    %s100 = sshll.u32 1, 1
    %s101 = ssub.s32 %s100, 1
    %102 = vst [vmem:[%s1] sm:%s101] %v99

// kernel: _conv_bn_silu_impl.1
$region0: #{_conv_bn_silu_impl.1}
  #allocation0 [shape = 'u32[]', space=smem, size = 0x4, offset = 0x4, fixed_abs, tag = 'smem constant byte address 0x4 - core index']
  #allocation1 [shape = 'u32[144,128]{1,0:T(1,128)}', space=vmem, size = 0x12000, scoped, tag = 'internal scratch']
  %s0 = inlined_call_operand.vmem [shape: bf16[2,18,64], index: 0, kind: input, shape index: {}]
  %s1 = inlined_call_operand.vmem [shape: bf16[3,64,128], index: 1, kind: input, shape index: {}]
  %s2 = inlined_call_operand.vmem [shape: f32[1,128], index: 2, kind: input, shape index: {}]
  %s3 = inlined_call_operand.vmem [shape: f32[2,16,128], index: 3, kind: output, shape index: {}]
  %s4 = sld [smem:[#allocation0]]
  $region45: #{_conv_bn_silu_impl.1} parent=0
    _
  %s6 = ssub.s32 1, %s4
  %s7 = scalar_select 0, %s6, %s4
  loop: start=0, step=1, limit=4
  $region2: #{_conv_bn_silu_impl.1} parent=0 // loop_pre_header
    _
  $region3: #{_conv_bn_silu_impl.1} parent=0 // loop_header
    %s9 = sphi 0, %s13
    %p10 = scmp.ge.s32.totalorder %s9, 4
    %s16 = sphi 0, %s35
    %s17 = sphi 0, %s31
    %s18 = sphi 0, %s27
    %s19 = sphi 0, %s16
    %s20 = sphi 0, %s17
    %s21 = sphi 0, %s18
    %s22 = sphi 0, %s19
    %s23 = sphi 0, %s20
    %s24 = sphi 0, %s21
    %s40 = sphi 0, %s42
    %s43 = sphi 0, %s40
    %s44 = sphi 0, %s43
    %s60 = sphi 0, %s44
    %s66 = sphi 0, %s68
    %s69 = sphi 0, %s66
    %s70 = sphi 0, %s69
    %s86 = sphi 0, %s70
    %s92 = sphi 0, %s94
    %s95 = sphi 0, %s92
    %s96 = sphi 0, %s95
    %s112 = sphi 0, %s96
    %s122 = sphi 0, %s124
    %s125 = sphi 0, %s122
    %s126 = sphi 0, %s125
    %s142 = sphi 0, %s126
  $region4: #{_conv_bn_silu_impl.1} parent=0 // loop_header_branch
    %12 = sbr.rel (%p10) target = $region8
  $region5: #{_conv_bn_silu_impl.1} parent=0 // loop_body
    %s14 = ssub.s32 %s9, 1
    %s15 = ssub.s32 %s9, 2
    %s25 = sadd.s32 1, %s18
    %p26 = scmp.ge.s32.totalorder %s25, 1
    %s27 = scalar_select %p26, 0, %s25
    %s28 = sadd.s32 1, %s17
    %s29 = scalar_select %p26, %s28, %s17
    %p30 = scmp.ge.s32.totalorder %s29, 2
    %s31 = scalar_select %p30, 0, %s29
    %s32 = sadd.s32 1, %s16
    %s33 = scalar_select %p30, %s32, %s16
    %p34 = scmp.ge.s32.totalorder %s33, 1
    %s35 = scalar_select %p34, 0, %s33
    %s36 = ssub.s32 %s17, %s31
    %s37 = ssub.s32 %s18, %s27
    %s38 = sor.u32 %s36, %s37
    %p39 = scmp.eq.s32.totalorder %s38, 0
    %s41 = sadd.s32 %s40, 1
    %s42 = scalar_select %p39, %s40, %s41
    %p45 = pneg %p39
    %p46 = scmp.eq.s32.totalorder %s9, 1
    %p47 = por %p45, %p46
    %p48 = scmp.ne.s32.totalorder %s40, %s43
    %p49 = scmp.eq.s32.totalorder %s9, 0
    %p50 = por %p48, %p49
    %p51 = scmp.ne.s32.totalorder %s40, %s43
    %p52 = scmp.eq.s32.totalorder %s14, 1
    %p53 = por %p51, %p52
    %p54 = scmp.ne.s32.totalorder %s43, %s44
    %p55 = scmp.eq.s32.totalorder %s14, 0
    %p56 = por %p54, %p55
    %p57 = scmp.ne.s32.totalorder %s43, %s44
    %p58 = scmp.eq.s32.totalorder %s15, 1
    %p59 = por %p57, %p58
    %p61 = scmp.ne.s32.totalorder %s44, %s60
    %p62 = scmp.eq.s32.totalorder %s15, 0
    %p63 = por %p61, %p62
    %s64 = ssub.s32 %s16, %s35
    %p65 = scmp.eq.s32.totalorder %s64, 0
    %s67 = sadd.s32 %s66, 1
    %s68 = scalar_select %p65, %s66, %s67
    %p71 = pneg %p65
    %p72 = scmp.eq.s32.totalorder %s9, 1
    %p73 = por %p71, %p72
    %p74 = scmp.ne.s32.totalorder %s66, %s69
    %p75 = scmp.eq.s32.totalorder %s9, 0
    %p76 = por %p74, %p75
    %p77 = scmp.ne.s32.totalorder %s66, %s69
    %p78 = scmp.eq.s32.totalorder %s14, 1
    %p79 = por %p77, %p78
    %p80 = scmp.ne.s32.totalorder %s69, %s70
    %p81 = scmp.eq.s32.totalorder %s14, 0
    %p82 = por %p80, %p81
    %p83 = scmp.ne.s32.totalorder %s69, %s70
    %p84 = scmp.eq.s32.totalorder %s15, 1
    %p85 = por %p83, %p84
    %p87 = scmp.ne.s32.totalorder %s70, %s86
    %p88 = scmp.eq.s32.totalorder %s15, 0
    %p89 = por %p87, %p88
    %s90 = ssub.s32 %s16, %s35
    %p91 = scmp.eq.s32.totalorder %s90, 0
    %s93 = sadd.s32 %s92, 1
    %s94 = scalar_select %p91, %s92, %s93
    %p97 = pneg %p91
    %p98 = scmp.eq.s32.totalorder %s9, 1
    %p99 = por %p97, %p98
    %p100 = scmp.ne.s32.totalorder %s92, %s95
    %p101 = scmp.eq.s32.totalorder %s9, 0
    %p102 = por %p100, %p101
    %p103 = scmp.ne.s32.totalorder %s92, %s95
    %p104 = scmp.eq.s32.totalorder %s14, 1
    %p105 = por %p103, %p104
    %p106 = scmp.ne.s32.totalorder %s95, %s96
    %p107 = scmp.eq.s32.totalorder %s14, 0
    %p108 = por %p106, %p107
    %p109 = scmp.ne.s32.totalorder %s95, %s96
    %p110 = scmp.eq.s32.totalorder %s15, 1
    %p111 = por %p109, %p110
    %p113 = scmp.ne.s32.totalorder %s96, %s112
    %p114 = scmp.eq.s32.totalorder %s15, 0
    %p115 = por %p113, %p114
    %s116 = ssub.s32 %s17, %s31
    %s117 = ssub.s32 %s18, %s27
    %s118 = sor.u32 %s116, %s117
    %s119 = ssub.s32 %s16, %s35
    %s120 = sor.u32 %s118, %s119
    %p121 = scmp.eq.s32.totalorder %s120, 0
    %s123 = sadd.s32 %s122, 1
    %s124 = scalar_select %p121, %s122, %s123
    %p127 = pneg %p121
    %p128 = scmp.eq.s32.totalorder %s9, 1
    %p129 = por %p127, %p128
    %p130 = scmp.ne.s32.totalorder %s122, %s125
    %p131 = scmp.eq.s32.totalorder %s9, 0
    %p132 = por %p130, %p131
    %p133 = scmp.ne.s32.totalorder %s122, %s125
    %p134 = scmp.eq.s32.totalorder %s14, 1
    %p135 = por %p133, %p134
    %p136 = scmp.ne.s32.totalorder %s125, %s126
    %p137 = scmp.eq.s32.totalorder %s14, 0
    %p138 = por %p136, %p137
    %p139 = scmp.ne.s32.totalorder %s125, %s126
    %p140 = scmp.eq.s32.totalorder %s15, 1
    %p141 = por %p139, %p140
    %p143 = scmp.ne.s32.totalorder %s126, %s142
    %p144 = scmp.eq.s32.totalorder %s15, 0
    %p145 = por %p143, %p144
    %p146 = scmp.le.s32.totalorder 1, %s9
    %p147 = scmp.lt.s32.totalorder %s9, 3
    %p148 = pnand %p146, %p147
    %p149 = pneg %p148
    // Predicated region
    $region9: #{_conv_bn_silu_impl.1} parent=5 // pred_check
      _
    $region10: #{_conv_bn_silu_impl.1} parent=5 // pred_check_branch
      %151 = sbr.rel (%p148) target = $region12
    $region11: #{_conv_bn_silu_impl.1} parent=5 // pred_region
      %s152 = ssub.s32 %s9, 1
      // Predicated region
      $region13: #{_conv_bn_silu_impl.1} parent=11 // pred_check
        %p153 = pneg %p82
      $region14: #{_conv_bn_silu_impl.1} parent=11 // pred_check_branch
        %155 = sbr.rel (%p153) target = $region16
      $region15: #{_conv_bn_silu_impl.1} parent=11 // pred_region
        %p156 = scmp.lt.s32.totalorder %s19, 0
        %s157 = scalar_select %p156, %s19, 0
        %s158 = smul.addr %s157, 4
        %s159 = scalar_lea.vmem %s1, %s158
      $region16: #{_conv_bn_silu_impl.1} parent=11 // pred_fallthru
        _
      // Predicated region
      $region17: #{_conv_bn_silu_impl.1} parent=11 // pred_check
        %p160 = pneg %p108
      $region18: #{_conv_bn_silu_impl.1} parent=11 // pred_check_branch
        %162 = sbr.rel (%p160) target = $region20
      $region19: #{_conv_bn_silu_impl.1} parent=11 // pred_region
        %p163 = scmp.lt.s32.totalorder %s19, 0
        %s164 = scalar_select %p163, %s19, 0
        %s165 = scalar_lea.vmem %s2, %s164
      $region20: #{_conv_bn_silu_impl.1} parent=11 // pred_fallthru
        _
    $region12: #{_conv_bn_silu_impl.1} parent=5 // pred_fallthru
      _
    %p166 = scmp.lt.s32.totalorder %s9, 2
    // Predicated region
    $region21: #{_conv_bn_silu_impl.1} parent=5 // pred_check
      %p167 = pneg %p166
    $region22: #{_conv_bn_silu_impl.1} parent=5 // pred_check_branch
      %169 = sbr.rel (%p167) target = $region24
    $region23: #{_conv_bn_silu_impl.1} parent=5 // pred_region
      // Predicated region
      $region25: #{_conv_bn_silu_impl.1} parent=23 // pred_check
        %p170 = pneg %p50
      $region26: #{_conv_bn_silu_impl.1} parent=23 // pred_check_branch
        %172 = sbr.rel (%p170) target = $region28
      $region27: #{_conv_bn_silu_impl.1} parent=23 // pred_region
        %s173 = smul.u32 3, %s18
        %p174 = scmp.lt.s32.totalorder %s17, 1
        %s175 = scalar_select %p174, %s17, 1
        %p176 = scmp.lt.s32.totalorder %s173, 2
        %s177 = scalar_select %p176, %s173, 2
        %s178 = smul.addr %s175, 3
        %s179 = sadd.s32 %s177, %s178
        %s180 = smul.addr %s179, 4
        %s181 = scalar_lea.vmem %s0, %s180
        %s182 = smul.u32 3, %s18
      $region28: #{_conv_bn_silu_impl.1} parent=23 // pred_fallthru
        _
    $region24: #{_conv_bn_silu_impl.1} parent=5 // pred_fallthru
      _
    %p183 = scmp.le.s32.totalorder 1, %s9
    %p184 = scmp.lt.s32.totalorder %s9, 3
    %p185 = pnand %p183, %p184
    %p186 = pneg %p185
    // Predicated region
    $region29: #{_conv_bn_silu_impl.1} parent=5 // pred_check
      _
    $region30: #{_conv_bn_silu_impl.1} parent=5 // pred_check_branch
      %188 = sbr.rel (%p185) target = $region32
    $region31: #{_conv_bn_silu_impl.1} parent=5 // pred_region
      %s189 = ssub.s32 %s9, 1
      %s190 = smul.u32 3, %s21
      %p191 = scmp.lt.s32.totalorder %s20, 1
      %s192 = scalar_select %p191, %s20, 1
      %p193 = scmp.lt.s32.totalorder %s190, 2
      %s194 = scalar_select %p193, %s190, 2
      %s195 = smul.addr %s192, 3
      %s196 = sadd.s32 %s194, %s195
      %s197 = smul.addr %s196, 4
      %s198 = scalar_lea.vmem %s0, %s197
      %p199 = pneg %p56
      %p200 = pneg %p53
      %p201 = scmp.lt.s32.totalorder %s19, 0
      %s202 = scalar_select %p201, %s19, 0
      %s203 = smul.addr %s202, 4
      %s204 = scalar_lea.vmem %s1, %s203
      %p205 = pneg %p82
      %p206 = pneg %p79
      %p207 = scmp.lt.s32.totalorder %s19, 0
      %s208 = scalar_select %p207, %s19, 0
      %s209 = scalar_lea.vmem %s2, %s208
      %p210 = pneg %p108
      %p211 = pneg %p105
      %p212 = pneg %p138
      %p213 = pneg %p135
      %s214 = smul.u32 2, %s21
      %p215 = scmp.lt.s32.totalorder %s20, 1
      %s216 = scalar_select %p215, %s20, 1
      %p217 = scmp.lt.s32.totalorder %s214, 1
      %s218 = scalar_select %p217, %s214, 1
      %p219 = scmp.lt.s32.totalorder %s19, 0
      %s220 = scalar_select %p219, %s19, 0
      %s221 = sadd.s32 %s220, %s218
      %s222 = smul.addr %s216, 2
      %s223 = sadd.s32 %s221, %s222
      %s224 = smul.addr %s223, 8
      %s225 = scalar_lea.vmem %s3, %s224
      %s226 = smul.u32 3, %s21
      %p227 = scmp.lt.s32.totalorder %s20, 1
      %s228 = scalar_select %p227, %s20, 1
      %p229 = scmp.lt.s32.totalorder %s226, 2
      %s230 = scalar_select %p229, %s226, 2
      %s231 = smul.addr %s228, 3
      %s232 = sadd.s32 %s230, %s231
      %s233 = smul.addr %s232, 4
      %s234 = scalar_lea.vmem %s0, %s233
      %s235 = smul.u32 3, %s21
      %p236 = scmp.lt.s32.totalorder %s19, 0
      %s237 = scalar_select %p236, %s19, 0
      %s238 = smul.addr %s237, 4
      %s239 = scalar_lea.vmem %s1, %s238
      %p240 = scmp.lt.s32.totalorder %s19, 0
      %s241 = scalar_select %p240, %s19, 0
      %s242 = scalar_lea.vmem %s2, %s241
      %s243 = smul.u32 2, %s21
      %p244 = scmp.lt.s32.totalorder %s20, 1
      %s245 = scalar_select %p244, %s20, 1
      %p246 = scmp.lt.s32.totalorder %s243, 1
      %s247 = scalar_select %p246, %s243, 1
      %p248 = scmp.lt.s32.totalorder %s19, 0
      %s249 = scalar_select %p248, %s19, 0
      %s250 = sadd.s32 %s249, %s247
      %s251 = smul.addr %s245, 2
      %s252 = sadd.s32 %s250, %s251
      %s253 = smul.addr %s252, 8
      %s254 = scalar_lea.vmem %s3, %s253
      %s255 = smul.u32 2, %s21
      %v257 = vld [vmem:[%s234] sm:$0xf]
      %v258 = vld [vmem:[%s234 + $0x4] sm:$0xf]
      %v259 = vld [vmem:[%s239] sm:$0xf]
      %v260 = vld [vmem:[%s239 + $0x4] sm:$0xf]
      %v261 = vld [vmem:[%s239 + $0x8] sm:$0xf]
      %v262 = vld [vmem:[%s239 + $0xc] sm:$0xf]
      %v263 = vld [vmem:[%s239 + $0x10] sm:$0xf]
      %v264 = vld [vmem:[%s239 + $0x14] sm:$0xf]
      %v265 = vld [vmem:[%s239 + $0x18] sm:$0xf]
      %v266 = vld [vmem:[%s239 + $0x1c] sm:$0xf]
      %v267 = vld [vmem:[%s234 + $0x8] sm:$0x1]
      %s268 = scalar_lea.vmem %s239, 32
      %v269 = vld [vmem:[%s268] sm:$0xf]
      %v270 = vld [vmem:[%s268 + $0x4] sm:$0xf]
      %v271 = vld [vmem:[%s268 + $0x8] sm:$0xf]
      %v272 = vld [vmem:[%s268 + $0xc] sm:$0xf]
      %v273 = vld [vmem:[%s268 + $0x10] sm:$0xf]
      %v274 = vld [vmem:[%s268 + $0x14] sm:$0xf]
      %v275 = vld [vmem:[%s268 + $0x18] sm:$0xf]
      %v276 = vld [vmem:[%s268 + $0x1c] sm:$0xf]
      %v280 = vunpack.c.l.b16 %v257
      %v281 = vunpack.c.l.b16 %v258
      %v282 = vunpack.c.l.b16 %v267
      %v283 = vpack.c.b16 %v281, %v280
      %v284 = vpack.c.b16 %v282, %v282
      %vm285 = vsmask.f32 7424
      %v287 = vshrl.u32 %v283, 16
      %v289 = vshll.u32 %v283, 16
      %v291 = vrot.slane %v289, 1
      %v292 = vor.u32 %v287, %v291
      %v294 = vshll.u32 %v284, 16
      %v296 = vrot.slane %v294, 1
      %v297 = vsel %vm285, %v292, %v296
      %v306 = vunpack.c.l.b16 %v269
      %v307 = vunpack.c.l.b16 %v270
      %v308 = vunpack.c.l.b16 %v271
      %v309 = vunpack.c.l.b16 %v272
      %v310 = vunpack.c.l.b16 %v273
      %v311 = vunpack.c.l.b16 %v274
      %v312 = vunpack.c.l.b16 %v275
      %v313 = vunpack.c.l.b16 %v276
      %v314 = vpack.c.b16 %v307, %v306
      %v315 = vpack.c.b16 %v309, %v308
      %v316 = vpack.c.b16 %v311, %v310
      %v317 = vpack.c.b16 %v313, %v312
      %vm322 = vcmask 523264
      %v324 = vsel %vm322, %v297, 0
      %326 = vmatprep.subr.bf16.mxu0 0
      %327 = vmatpush1.bf16.msra.mxu0 0
      %328 = vmatprep.subr.bf16.mxu0 0
      %329 = vmatpush1.bf16.msra.mxu0 0
      %330 = vmatprep.subr.bf16.mxu0 0
      %331 = vmatpush1.bf16.msra.mxu0 0
      %332 = vmatprep.subr.bf16.mxu0 0
      %333 = vmatpush1.bf16.msra.mxu0 0
      %334 = vmatprep.subr.bf16.mxu0 0
      %335 = vmatpush1.bf16.msra.mxu0 %v317
      %336 = vmatprep.subr.bf16.mxu0 0
      %337 = vmatpush1.bf16.msra.mxu0 %v316
      %338 = vmatprep.subr.bf16.mxu0 0
      %339 = vmatpush1.bf16.msra.mxu0 %v315
      %340 = vmatprep.subr.bf16.mxu0 0
      %341 = vmatpush1.bf16.msra.mxu0 %v314
      %342 = vmatprep.subr.bf16.mxu0 0
      %343 = vmatpush2.bf16.msra.mxu0 0
      %344 = vmatprep.subr.bf16.mxu0 0
      %345 = vmatpush2.bf16.msra.mxu0 0
      %346 = vmatprep.subr.bf16.mxu0 0
      %347 = vmatpush2.bf16.msra.mxu0 0
      %348 = vmatprep.subr.bf16.mxu0 0
      %349 = vmatpush2.bf16.msra.mxu0 0
      %350 = vmatprep.subr.bf16.mxu0 0
      %351 = vmatpush2.bf16.msra.mxu0 0
      %352 = vmatprep.subr.bf16.mxu0 0
      %353 = vmatpush2.bf16.msra.mxu0 0
      %354 = vmatprep.subr.bf16.mxu0 0
      %355 = vmatpush2.bf16.msra.mxu0 0
      %356 = vmatprep.subr.bf16.mxu0 0
      %357 = vmatpush2.bf16.msra.mxu0 0
      %358 = vmatprep.mubr.bf16.mxu0 0
      %359 = vmatmul.mubr.bf16.gmra.mxu0 %v324
      %v360 = vpop.f32.mrf.mxu0
      %v361 = vadd.f32 0.0, %v360
      %v362 = vpop.f32.mrf.mxu0
      %v363 = vpop.f32.mrf.mxu0
      %v364 = vadd.f32 0.0, %v363
      %v365 = vpop.f32.mrf.mxu0
      %366 = vdwg.mxu0
      %v375 = vunpack.c.l.b16 %v259
      %v376 = vunpack.c.l.b16 %v260
      %v377 = vunpack.c.l.b16 %v261
      %v378 = vunpack.c.l.b16 %v262
      %v379 = vunpack.c.l.b16 %v263
      %v380 = vunpack.c.l.b16 %v264
      %v381 = vunpack.c.l.b16 %v265
      %v382 = vunpack.c.l.b16 %v266
      %v383 = vpack.c.b16 %v376, %v375
      %v384 = vpack.c.b16 %v378, %v377
      %v385 = vpack.c.b16 %v380, %v379
      %v386 = vpack.c.b16 %v382, %v381
      %v391 = vsel %vm322, %v283, 0
      %393 = vmatprep.subr.bf16.mxu0 0
      %394 = vmatpush1.bf16.msra.mxu0 0
      %395 = vmatprep.subr.bf16.mxu0 0
      %396 = vmatpush1.bf16.msra.mxu0 0
      %397 = vmatprep.subr.bf16.mxu0 0
      %398 = vmatpush1.bf16.msra.mxu0 0
      %399 = vmatprep.subr.bf16.mxu0 0
      %400 = vmatpush1.bf16.msra.mxu0 0
      %401 = vmatprep.subr.bf16.mxu0 0
      %402 = vmatpush1.bf16.msra.mxu0 %v386
      %403 = vmatprep.subr.bf16.mxu0 0
      %404 = vmatpush1.bf16.msra.mxu0 %v385
      %405 = vmatprep.subr.bf16.mxu0 0
      %406 = vmatpush1.bf16.msra.mxu0 %v384
      %407 = vmatprep.subr.bf16.mxu0 0
      %408 = vmatpush1.bf16.msra.mxu0 %v383
      %409 = vmatprep.subr.bf16.mxu0 0
      %410 = vmatpush2.bf16.msra.mxu0 0
      %411 = vmatprep.subr.bf16.mxu0 0
      %412 = vmatpush2.bf16.msra.mxu0 0
      %413 = vmatprep.subr.bf16.mxu0 0
      %414 = vmatpush2.bf16.msra.mxu0 0
      %415 = vmatprep.subr.bf16.mxu0 0
      %416 = vmatpush2.bf16.msra.mxu0 0
      %417 = vmatprep.subr.bf16.mxu0 0
      %418 = vmatpush2.bf16.msra.mxu0 0
      %419 = vmatprep.subr.bf16.mxu0 0
      %420 = vmatpush2.bf16.msra.mxu0 0
      %421 = vmatprep.subr.bf16.mxu0 0
      %422 = vmatpush2.bf16.msra.mxu0 0
      %423 = vmatprep.subr.bf16.mxu0 0
      %424 = vmatpush2.bf16.msra.mxu0 0
      %425 = vmatprep.mubr.bf16.mxu0 0
      %426 = vmatmul.mubr.bf16.gmra.mxu0 %v391
      %v427 = vpop.f32.mrf.mxu0
      %v428 = vadd.f32 %v361, %v427
      %v429 = vpop.f32.mrf.mxu0
      %v430 = vpop.f32.mrf.mxu0
      %v431 = vadd.f32 %v364, %v430
      %v432 = vpop.f32.mrf.mxu0
      %433 = vdwg.mxu0
      %v434 = vld [vmem:[%s234] sm:$0xe]
      %s435 = scalar_lea.vmem %s239, 64
      %v436 = vld [vmem:[%s435] sm:$0xf]
      %v437 = vld [vmem:[%s435 + $0x4] sm:$0xf]
      %v438 = vld [vmem:[%s435 + $0x8] sm:$0xf]
      %v439 = vld [vmem:[%s435 + $0xc] sm:$0xf]
      %v440 = vld [vmem:[%s435 + $0x10] sm:$0xf]
      %v441 = vld [vmem:[%s435 + $0x14] sm:$0xf]
      %v442 = vld [vmem:[%s435 + $0x18] sm:$0xf]
      %v443 = vld [vmem:[%s435 + $0x1c] sm:$0xf]
      %v445 = vunpack.c.l.b16 %v434
      %v446 = vpack.c.b16 %v281, %v445
      %vm447 = vcmask 1046528
      %v448 = vrot.slane %v446, 1
      %v449 = vrot.slane %v284, 1
      %v450 = vsel %vm447, %v448, %v449
      %v459 = vunpack.c.l.b16 %v436
      %v460 = vunpack.c.l.b16 %v437
      %v461 = vunpack.c.l.b16 %v438
      %v462 = vunpack.c.l.b16 %v439
      %v463 = vunpack.c.l.b16 %v440
      %v464 = vunpack.c.l.b16 %v441
      %v465 = vunpack.c.l.b16 %v442
      %v466 = vunpack.c.l.b16 %v443
      %v467 = vpack.c.b16 %v460, %v459
      %v468 = vpack.c.b16 %v462, %v461
      %v469 = vpack.c.b16 %v464, %v463
      %v470 = vpack.c.b16 %v466, %v465
      %v476 = vsel %vm322, %v450, 0
      %478 = vmatprep.subr.bf16.mxu0 0
      %479 = vmatpush1.bf16.msra.mxu0 0
      %480 = vmatprep.subr.bf16.mxu0 0
      %481 = vmatpush1.bf16.msra.mxu0 0
      %482 = vmatprep.subr.bf16.mxu0 0
      %483 = vmatpush1.bf16.msra.mxu0 0
      %484 = vmatprep.subr.bf16.mxu0 0
      %485 = vmatpush1.bf16.msra.mxu0 0
      %486 = vmatprep.subr.bf16.mxu0 0
      %487 = vmatpush1.bf16.msra.mxu0 %v470
      %488 = vmatprep.subr.bf16.mxu0 0
      %489 = vmatpush1.bf16.msra.mxu0 %v469
      %490 = vmatprep.subr.bf16.mxu0 0
      %491 = vmatpush1.bf16.msra.mxu0 %v468
      %492 = vmatprep.subr.bf16.mxu0 0
      %493 = vmatpush1.bf16.msra.mxu0 %v467
      %494 = vmatprep.subr.bf16.mxu0 0
      %495 = vmatpush2.bf16.msra.mxu0 0
      %496 = vmatprep.subr.bf16.mxu0 0
      %497 = vmatpush2.bf16.msra.mxu0 0
      %498 = vmatprep.subr.bf16.mxu0 0
      %499 = vmatpush2.bf16.msra.mxu0 0
      %500 = vmatprep.subr.bf16.mxu0 0
      %501 = vmatpush2.bf16.msra.mxu0 0
      %502 = vmatprep.subr.bf16.mxu0 0
      %503 = vmatpush2.bf16.msra.mxu0 0
      %504 = vmatprep.subr.bf16.mxu0 0
      %505 = vmatpush2.bf16.msra.mxu0 0
      %506 = vmatprep.subr.bf16.mxu0 0
      %507 = vmatpush2.bf16.msra.mxu0 0
      %508 = vmatprep.subr.bf16.mxu0 0
      %509 = vmatpush2.bf16.msra.mxu0 0
      %510 = vmatprep.mubr.bf16.mxu0 0
      %511 = vmatmul.mubr.bf16.gmra.mxu0 %v476
      %v512 = vpop.f32.mrf.mxu0
      %v513 = vadd.f32 0.0, %v512
      %v514 = vpop.f32.mrf.mxu0
      %v515 = vpop.f32.mrf.mxu0
      %v516 = vadd.f32 0.0, %v515
      %v517 = vpop.f32.mrf.mxu0
      %518 = vdwg.mxu0
      %v519 = vadd.f32 %v428, %v513
      %v520 = vadd.f32 %v431, %v516
      %v521 = vld [vmem:[%s242] sm:$0x1]
      %v523 = vlaneseq
      %v524 = vshrl.u32 %v523, 7
      %v525 = vsub.s32 0, %v524
      %v526 = vrot.slane %v521, %v525
      %v528 = vadd.f32 %v519, %v526
      %v529 = vadd.f32 %v520, %v526
      %v530 = vsub.f32 0.0, %v528
      %v531 = vsub.f32 0.0, %v529
      %v532 = vmul.f32 %v530, 1.442695
      %v533 = vpow.pop %v532
      %v534 = vmul.f32 %v531, 1.442695
      %v535 = vpow.pop %v534
      %v536 = vadd.f32 %v533, 1.0
      %v537 = vadd.f32 %v535, 1.0
      %v538 = vrcp.pop %v536
      %v539 = vrcp.pop %v537
      %v540 = vmul.f32 %v528, %v538
      %v541 = vmul.f32 %v529, %v539
      %542 = vst [vmem:[%s254] sm:$0xff] %v540
      %543 = vst [vmem:[%s254 + $0x8] sm:$0xff] %v541
      %s544 = smul.u32 2, %s21
      %p545 = scmp.lt.s32.totalorder %s20, 1
      %s546 = scalar_select %p545, %s20, 1
      %p547 = scmp.lt.s32.totalorder %s544, 1
      %s548 = scalar_select %p547, %s544, 1
      %p549 = scmp.lt.s32.totalorder %s19, 0
      %s550 = scalar_select %p549, %s19, 0
      %s551 = sadd.s32 %s550, %s548
      %s552 = smul.addr %s546, 2
      %s553 = sadd.s32 %s551, %s552
      %s554 = smul.addr %s553, 8
      %s555 = scalar_lea.vmem %s3, %s554
      // Predicated region
      $region33: #{_conv_bn_silu_impl.1} parent=31 // pred_check
        %p556 = pneg %p135
      $region34: #{_conv_bn_silu_impl.1} parent=31 // pred_check_branch
        %558 = sbr.rel (%p556) target = $region36
      $region35: #{_conv_bn_silu_impl.1} parent=31 // pred_region
        %s559 = smul.u32 2, %s21
      $region36: #{_conv_bn_silu_impl.1} parent=31 // pred_fallthru
        _
    $region32: #{_conv_bn_silu_impl.1} parent=5 // pred_fallthru
      _
    %p560 = scmp.le.s32.totalorder 2, %s9
    // Predicated region
    $region37: #{_conv_bn_silu_impl.1} parent=5 // pred_check
      %p561 = pneg %p560
    $region38: #{_conv_bn_silu_impl.1} parent=5 // pred_check_branch
      %563 = sbr.rel (%p561) target = $region40
    $region39: #{_conv_bn_silu_impl.1} parent=5 // pred_region
      %s564 = ssub.s32 %s9, 2
      // Predicated region
      $region41: #{_conv_bn_silu_impl.1} parent=39 // pred_check
        %p565 = pneg %p141
      $region42: #{_conv_bn_silu_impl.1} parent=39 // pred_check_branch
        %567 = sbr.rel (%p565) target = $region44
      $region43: #{_conv_bn_silu_impl.1} parent=39 // pred_region
        %s568 = smul.u32 2, %s24
        %p569 = scmp.lt.s32.totalorder %s23, 1
        %s570 = scalar_select %p569, %s23, 1
        %p571 = scmp.lt.s32.totalorder %s568, 1
        %s572 = scalar_select %p571, %s568, 1
        %p573 = scmp.lt.s32.totalorder %s22, 0
        %s574 = scalar_select %p573, %s22, 0
        %s575 = sadd.s32 %s574, %s572
        %s576 = smul.addr %s570, 2
        %s577 = sadd.s32 %s575, %s576
        %s578 = smul.addr %s577, 8
        %s579 = scalar_lea.vmem %s3, %s578
      $region44: #{_conv_bn_silu_impl.1} parent=39 // pred_fallthru
        _
    $region40: #{_conv_bn_silu_impl.1} parent=5 // pred_fallthru
      _
  $region6: #{_conv_bn_silu_impl.1} parent=0 // loop_footer
    %s13 = sadd.s32 1, %s9
  $region7: #{_conv_bn_silu_impl.1} parent=0 // loop_footer_branch
    %8 = sbr.rel target = $region3
  $region8: #{_conv_bn_silu_impl.1} parent=0 // loop_exit
    _

</llo_original>
